<compile_context>
chip_gen: v7x
topology: tpu7x:2x2x1
jax: 0.10.0
libtpu: 0.0.40
codegen_flags: <defaults>
</compile_context>

<pallas_src>
import jax
import jax.numpy as jnp
from jax.experimental import pallas as pl
from jax.experimental.pallas import tpu as pltpu


def _conv_layer_kernel(mat_ref, w_ref, b_ref, o_ref):
    # mat_ref: (tile_m, 7*in_feats)  bf16 VMEM  (gathered neighbor features)
    # w_ref:   (7*in_feats, tile_n)  bf16 VMEM  (nn.Linear weight, transposed)
    # b_ref:   (1, tile_n)           f32  VMEM
    # o_ref:   (tile_m, tile_n)      out-dtype VMEM
    acc = jnp.dot(mat_ref[...], w_ref[...], preferred_element_type=jnp.float32)
    o_ref[...] = (acc + b_ref[...]).astype(o_ref.dtype)


def conv_layer_forward(x, neigh_orders, weight, bias, *,
                       tile_m=256, tile_n=None,
                       compute_dtype=jnp.bfloat16):
    """x: (N, in_feats); neigh_orders: (7*N,) int32;
    weight: (out_feats, 7*in_feats); bias: (out_feats,).
    Returns (N, out_feats) in x.dtype."""
    n, in_feats = x.shape
    k = 7 * in_feats                      # fused-K layout (keep: in_feats << 128,
                                          # splitting into 7 small-K matmuls would
                                          # pad each K to 128 and be strictly worse)
    out_feats = weight.shape[0]
    out_dtype = x.dtype

    # ---- tile-size selection (multiples of bf16 sublane packing) -----------
    tile_m = int(tile_m)
    if tile_m >= n:
        tile_m = n                        # single block == full dim, always legal
    else:
        tile_m = max(16, (tile_m // 16) * 16)

    if tile_n is None or int(tile_n) >= out_feats:
        tile_n = out_feats                # full-width weight slab: mat fetched once
    else:
        tile_n = max(128, (int(tile_n) // 128) * 128)   # keep output lane-dense

    bpe = jnp.dtype(compute_dtype).itemsize
    obe = jnp.dtype(out_dtype).itemsize

    def _pipeline_bytes(tm, tn):
        # every pallas_call input/output block is double-buffered by the pipeline
        return 2 * (tm * k * bpe + k * tn * bpe + tn * 4 + tm * tn * obe)

    # Stay well inside v7x's 64 MiB VMEM (v5e/v6e have 128 MiB of headroom).
    budget = 48 * 1024 * 1024
    while tile_m > 16 and _pipeline_bytes(tile_m, tile_n) > budget:
        tile_m = max(16, ((tile_m // 2) // 16) * 16)

    vmem_limit = int(min(max(_pipeline_bytes(tile_m, tile_n) + (8 << 20),
                             32 << 20), 64 << 20))

    # ---- glue: neighbor gather (XLA) in bf16, weight transposed ------------
    xb = x.astype(compute_dtype)
    mat = jnp.take(xb, neigh_orders, axis=0).reshape(n, k)   # (N, 7*in_feats) bf16
    w_t = weight.T.astype(compute_dtype)                      # (7*in_feats, out_feats)
    b2 = bias.reshape(1, out_feats).astype(jnp.float32)       # keep bias in f32

    grid = (pl.cdiv(n, tile_m), pl.cdiv(out_feats, tile_n))

    return pl.pallas_call(
        _conv_layer_kernel,
        out_shape=jax.ShapeDtypeStruct((n, out_feats), out_dtype),
        grid_spec=pltpu.PrefetchScalarGridSpec(
            num_scalar_prefetch=0,
            grid=grid,
            in_specs=[
                # mat block index constant along inner j axis -> fetched once per i.
                pl.BlockSpec((tile_m, k), lambda i, j: (i, 0)),
                # weight / bias blocks vary only with j (constant when tile_n == out_feats).
                pl.BlockSpec((k, tile_n), lambda i, j: (0, j)),
                pl.BlockSpec((1, tile_n), lambda i, j: (0, j)),
            ],
            out_specs=pl.BlockSpec((tile_m, tile_n), lambda i, j: (i, j)),
        ),
        compiler_params=pltpu.CompilerParams(
            # Both axes independent -> shard across the two v7x TensorCores.
            dimension_semantics=("parallel", "parallel"),
            vmem_limit_bytes=vmem_limit,
        ),
    )(mat, w_t, b2)


if __name__ == "__main__":
    # Small, module-consistent shapes (spherical mesh vertices x features).
    num_vertices = 512
    in_feats = 16
    out_feats = 128          # lane-dense output width for the demo
    fan_in = 7 * in_feats

    key = jax.random.PRNGKey(0)
    kx, kn, kw, kb = jax.random.split(key, 4)

    x = jax.random.normal(kx, (num_vertices, in_feats), dtype=jnp.float32)
    # 7 neighbour indices per vertex (flat, like the PyTorch neigh_orders array).
    neigh_orders = jax.random.randint(
        kn, (7 * num_vertices,), 0, num_vertices, dtype=jnp.int32)

    # Deterministic nn.Linear-style init: U(-1/sqrt(fan_in), 1/sqrt(fan_in)).
    bound = 1.0 / (fan_in ** 0.5)
    weight = jax.random.uniform(
        kw, (out_feats, fan_in), minval=-bound, maxval=bound, dtype=jnp.float32)
    bias = jax.random.uniform(
        kb, (out_feats,), minval=-bound, maxval=bound, dtype=jnp.float32)

    out = jax.jit(conv_layer_forward)(x, neigh_orders, weight, bias)
    out = jax.block_until_ready(out)
    assert out.shape == (num_vertices, out_feats)

    # Reference with the same bf16-rounded operands the kernel multiplies
    # (tight tolerance: only f32 summation-order differences remain).
    xb = x.astype(jnp.bfloat16).astype(jnp.float32)
    wb = weight.astype(jnp.bfloat16).astype(jnp.float32)
    mat_ref = jnp.take(xb, neigh_orders, axis=0).reshape(num_vertices, fan_in)
    ref = jnp.dot(mat_ref, wb.T, precision=jax.lax.Precision.HIGHEST) + bias
    assert jnp.allclose(out, ref, atol=2e-3, rtol=2e-3)

    # Sanity check against the pure-f32 PyTorch semantics (bf16 rounding only).
    mat_f32 = jnp.take(x, neigh_orders, axis=0).reshape(num_vertices, fan_in)
    ref_f32 = jnp.dot(mat_f32, weight.T, precision=jax.lax.Precision.HIGHEST) + bias
    assert jnp.allclose(out, ref_f32, atol=5e-2, rtol=5e-2)

    print("KERNEL_OK")
</pallas_src>

<mosaic_0001>
module attributes {stable_mosaic.version = 11 : i64} {
  func.func @_conv_layer_kernel(%arg0: i32, %arg1: i32, %arg2: memref<256x112xbf16, #tpu.memory_space<vmem>>, %arg3: memref<112x128xbf16, #tpu.memory_space<vmem>>, %arg4: memref<1x128xf32, #tpu.memory_space<vmem>>, %arg5: memref<256x128xf32, #tpu.memory_space<vmem>>) attributes {dimension_semantics = [#tpu.dimension_semantics<parallel>, #tpu.dimension_semantics<parallel>], iteration_bounds = array<i64: 2, 1>, scalar_prefetch = 0 : i64, scratch_operands = 0 : i64, tpu.core_type = #tpu.core_type<tc>, window_params = [{transform_indices = @transform_0, window_bounds = array<i64: 256, 112>}, {transform_indices = @transform_1, window_bounds = array<i64: 112, 128>}, {transform_indices = @transform_2, window_bounds = array<i64: 1, 128>}, {transform_indices = @transform_3, window_bounds = array<i64: 256, 128>}]} {
    %c0 = arith.constant 0 : index
    %c0_0 = arith.constant 0 : index
    %0 = vector.load %arg2[%c0, %c0_0] : memref<256x112xbf16, #tpu.memory_space<vmem>>, vector<256x112xbf16>
    %c0_1 = arith.constant 0 : index
    %c0_2 = arith.constant 0 : index
    %1 = vector.load %arg3[%c0_1, %c0_2] : memref<112x128xbf16, #tpu.memory_space<vmem>>, vector<112x128xbf16>
    %cst = arith.constant dense<0.000000e+00> : vector<256x128xf32>
    %2 = tpu.matmul %0, %1, %cst {dimension_numbers = #tpu.dot_dimension_numbers<[1], [0], [0], [1], [0, 0, 1, 1], [], []>} : vector<256x112xbf16>, vector<112x128xbf16>, vector<256x128xf32> -> vector<256x128xf32>
    %c0_3 = arith.constant 0 : index
    %c0_4 = arith.constant 0 : index
    %3 = vector.load %arg4[%c0_3, %c0_4] : memref<1x128xf32, #tpu.memory_space<vmem>>, vector<1x128xf32>
    %4 = vector.broadcast %3 : vector<1x128xf32> to vector<256x128xf32>
    %5 = arith.addf %2, %4 : vector<256x128xf32>
    %c0_5 = arith.constant 0 : index
    %c0_6 = arith.constant 0 : index
    %6 = vector.load %arg5[%c0_5, %c0_6] : memref<256x128xf32, #tpu.memory_space<vmem>>, vector<256x128xf32>
    tpu.vector_store %arg5[%c0_5, %c0_6], %5 {strides = array<i32>} : memref<256x128xf32, #tpu.memory_space<vmem>>, vector<256x128xf32>,
    return
  }
  func.func @transform_0(%arg0: i32, %arg1: i32) -> (i32, i32) {
    %c0_i32 = arith.constant 0 : i32
    %c0_i32_0 = arith.constant 0 : i32
    return %arg0, %c0_i32 : i32, i32
  }
  func.func @transform_1(%arg0: i32, %arg1: i32) -> (i32, i32) {
    %c0_i32 = arith.constant 0 : i32
    %c0_i32_0 = arith.constant 0 : i32
    return %c0_i32, %arg1 : i32, i32
  }
  func.func @transform_2(%arg0: i32, %arg1: i32) -> (i32, i32) {
    %c0_i32 = arith.constant 0 : i32
    %c0_i32_0 = arith.constant 0 : i32
    return %c0_i32, %arg1 : i32, i32
  }
  func.func @transform_3(%arg0: i32, %arg1: i32) -> (i32, i32) {
    %c0_i32 = arith.constant 0 : i32
    return %arg0, %arg1 : i32, i32
  }
}

</mosaic_0001>

<llo_original>
// kernel: conv_layer_forward.1
$region0: #{conv_layer_forward.1}
  #allocation0 [shape = 'u32[]', space=smem, size = 0x4, offset = 0x4, fixed_abs, tag = 'smem constant byte address 0x4 - core index']
  #allocation1 [shape = 'u32[144,128]{1,0:T(1,128)}', space=vmem, size = 0x12000, scoped, tag = 'internal scratch']
  %s0 = inlined_call_operand.vmem [shape: bf16[512,112], index: 0, kind: input, shape index: {}]
  %s1 = inlined_call_operand.vmem [shape: bf16[112,128], index: 1, kind: input, shape index: {}]
  %s2 = inlined_call_operand.vmem [shape: f32[1,128], index: 2, kind: input, shape index: {}]
  %s3 = inlined_call_operand.hbm [shape: f32[512,128], index: 3, kind: output, shape index: {}]
  %s4 = sld [smem:[#allocation0]]
  $region45: #{conv_layer_forward.1} parent=0
    _
  %s6 = ssub.s32 1, %s4
  %s7 = scalar_select 0, %s6, %s4
  $region1: #{conv_layer_forward.1} parent=0
    #allocation2 [shape = 'u8[262144]{0}', space=vmem, size = 0x40000, scoped, tag = 'output window, operand 0']
    #allocation3 [shape = 's32[2]{0}', space=sflag, size = 0x8, scoped, tag = 'scoped memory for conv_layer_forward.1']
    %8 = vsyncpa [#allocation3], 0
    %s9 = scalar_lea.sflag [#allocation3], 1
    %10 = vsyncpa %s9, 0
    loop: start=0, step=1, limit=4
    $region2: #{conv_layer_forward.1} parent=1 // loop_pre_header
      _
    $region3: #{conv_layer_forward.1} parent=1 // loop_header
      %s12 = sphi 0, %s16
      %p13 = scmp.ge.s32.totalorder %s12, 4
      %s19 = sphi 0, %s31
      %s20 = sphi 0, %s27
      %s21 = sphi 0, %s19
      %s22 = sphi 0, %s20
      %s23 = sphi 0, %s21
      %s24 = sphi 0, %s22
      %s34 = sphi 0, %s36
      %s37 = sphi 0, %s34
      %s38 = sphi 0, %s37
      %s54 = sphi 0, %s38
      %s60 = sphi 0, %s62
      %s63 = sphi 0, %s60
      %s64 = sphi 0, %s63
      %s80 = sphi 0, %s64
      %s86 = sphi 0, %s88
      %s89 = sphi 0, %s86
      %s90 = sphi 0, %s89
      %s106 = sphi 0, %s90
      %s114 = sphi 0, %s116
      %s117 = sphi 0, %s114
      %s118 = sphi 0, %s117
      %s134 = sphi 0, %s118
    $region4: #{conv_layer_forward.1} parent=1 // loop_header_branch
      %15 = sbr.rel (%p13) target = $region8
    $region5: #{conv_layer_forward.1} parent=1 // loop_body
      %s17 = ssub.s32 %s12, 1
      %s18 = ssub.s32 %s12, 2
      %s25 = sadd.s32 1, %s20
      %p26 = scmp.ge.s32.totalorder %s25, 1
      %s27 = scalar_select %p26, 0, %s25
      %s28 = sadd.s32 1, %s19
      %s29 = scalar_select %p26, %s28, %s19
      %p30 = scmp.ge.s32.totalorder %s29, 2
      %s31 = scalar_select %p30, 0, %s29
      %s32 = ssub.s32 %s19, %s31
      %p33 = scmp.eq.s32.totalorder %s32, 0
      %s35 = sadd.s32 %s34, 1
      %s36 = scalar_select %p33, %s34, %s35
      %p39 = pneg %p33
      %p40 = scmp.eq.s32.totalorder %s12, 1
      %p41 = por %p39, %p40
      %p42 = scmp.ne.s32.totalorder %s34, %s37
      %p43 = scmp.eq.s32.totalorder %s12, 0
      %p44 = por %p42, %p43
      %p45 = scmp.ne.s32.totalorder %s34, %s37
      %p46 = scmp.eq.s32.totalorder %s17, 1
      %p47 = por %p45, %p46
      %p48 = scmp.ne.s32.totalorder %s37, %s38
      %p49 = scmp.eq.s32.totalorder %s17, 0
      %p50 = por %p48, %p49
      %p51 = scmp.ne.s32.totalorder %s37, %s38
      %p52 = scmp.eq.s32.totalorder %s18, 1
      %p53 = por %p51, %p52
      %p55 = scmp.ne.s32.totalorder %s38, %s54
      %p56 = scmp.eq.s32.totalorder %s18, 0
      %p57 = por %p55, %p56
      %s58 = ssub.s32 %s20, %s27
      %p59 = scmp.eq.s32.totalorder %s58, 0
      %s61 = sadd.s32 %s60, 1
      %s62 = scalar_select %p59, %s60, %s61
      %p65 = pneg %p59
      %p66 = scmp.eq.s32.totalorder %s12, 1
      %p67 = por %p65, %p66
      %p68 = scmp.ne.s32.totalorder %s60, %s63
      %p69 = scmp.eq.s32.totalorder %s12, 0
      %p70 = por %p68, %p69
      %p71 = scmp.ne.s32.totalorder %s60, %s63
      %p72 = scmp.eq.s32.totalorder %s17, 1
      %p73 = por %p71, %p72
      %p74 = scmp.ne.s32.totalorder %s63, %s64
      %p75 = scmp.eq.s32.totalorder %s17, 0
      %p76 = por %p74, %p75
      %p77 = scmp.ne.s32.totalorder %s63, %s64
      %p78 = scmp.eq.s32.totalorder %s18, 1
      %p79 = por %p77, %p78
      %p81 = scmp.ne.s32.totalorder %s64, %s80
      %p82 = scmp.eq.s32.totalorder %s18, 0
      %p83 = por %p81, %p82
      %s84 = ssub.s32 %s20, %s27
      %p85 = scmp.eq.s32.totalorder %s84, 0
      %s87 = sadd.s32 %s86, 1
      %s88 = scalar_select %p85, %s86, %s87
      %p91 = pneg %p85
      %p92 = scmp.eq.s32.totalorder %s12, 1
      %p93 = por %p91, %p92
      %p94 = scmp.ne.s32.totalorder %s86, %s89
      %p95 = scmp.eq.s32.totalorder %s12, 0
      %p96 = por %p94, %p95
      %p97 = scmp.ne.s32.totalorder %s86, %s89
      %p98 = scmp.eq.s32.totalorder %s17, 1
      %p99 = por %p97, %p98
      %p100 = scmp.ne.s32.totalorder %s89, %s90
      %p101 = scmp.eq.s32.totalorder %s17, 0
      %p102 = por %p100, %p101
      %p103 = scmp.ne.s32.totalorder %s89, %s90
      %p104 = scmp.eq.s32.totalorder %s18, 1
      %p105 = por %p103, %p104
      %p107 = scmp.ne.s32.totalorder %s90, %s106
      %p108 = scmp.eq.s32.totalorder %s18, 0
      %p109 = por %p107, %p108
      %s110 = ssub.s32 %s19, %s31
      %s111 = ssub.s32 %s20, %s27
      %s112 = sor.u32 %s110, %s111
      %p113 = scmp.eq.s32.totalorder %s112, 0
      %s115 = sadd.s32 %s114, 1
      %s116 = scalar_select %p113, %s114, %s115
      %p119 = pneg %p113
      %p120 = scmp.eq.s32.totalorder %s12, 1
      %p121 = por %p119, %p120
      %p122 = scmp.ne.s32.totalorder %s114, %s117
      %p123 = scmp.eq.s32.totalorder %s12, 0
      %p124 = por %p122, %p123
      %p125 = scmp.ne.s32.totalorder %s114, %s117
      %p126 = scmp.eq.s32.totalorder %s17, 1
      %p127 = por %p125, %p126
      %p128 = scmp.ne.s32.totalorder %s117, %s118
      %p129 = scmp.eq.s32.totalorder %s17, 0
      %p130 = por %p128, %p129
      %p131 = scmp.ne.s32.totalorder %s117, %s118
      %p132 = scmp.eq.s32.totalorder %s18, 1
      %p133 = por %p131, %p132
      %p135 = scmp.ne.s32.totalorder %s118, %s134
      %p136 = scmp.eq.s32.totalorder %s18, 0
      %p137 = por %p135, %p136
      %p138 = scmp.le.s32.totalorder 1, %s12
      %p139 = scmp.lt.s32.totalorder %s12, 3
      %p140 = pnand %p138, %p139
      %p141 = pneg %p140
      // Predicated region
      $region9: #{conv_layer_forward.1} parent=5 // pred_check
        _
      $region10: #{conv_layer_forward.1} parent=5 // pred_check_branch
        %143 = sbr.rel (%p140) target = $region12
      $region11: #{conv_layer_forward.1} parent=5 // pred_region
        %s144 = ssub.s32 %s12, 1
        // Predicated region
        $region13: #{conv_layer_forward.1} parent=11 // pred_check
          %p145 = pneg %p76
        $region14: #{conv_layer_forward.1} parent=11 // pred_check_branch
          %147 = sbr.rel (%p145) target = $region16
        $region15: #{conv_layer_forward.1} parent=11 // pred_region
          %p148 = scmp.lt.s32.totalorder %s22, 0
          %s149 = scalar_select %p148, %s22, 0
          %s150 = smul.addr %s149, 4
          %s151 = scalar_lea.vmem %s1, %s150
        $region16: #{conv_layer_forward.1} parent=11 // pred_fallthru
          _
        // Predicated region
        $region17: #{conv_layer_forward.1} parent=11 // pred_check
          %p152 = pneg %p102
        $region18: #{conv_layer_forward.1} parent=11 // pred_check_branch
          %154 = sbr.rel (%p152) target = $region20
        $region19: #{conv_layer_forward.1} parent=11 // pred_region
          %p155 = scmp.lt.s32.totalorder %s22, 0
          %s156 = scalar_select %p155, %s22, 0
          %s157 = scalar_lea.vmem %s2, %s156
        $region20: #{conv_layer_forward.1} parent=11 // pred_fallthru
          _
      $region12: #{conv_layer_forward.1} parent=5 // pred_fallthru
        _
      %p158 = scmp.lt.s32.totalorder %s12, 2
      // Predicated region
      $region21: #{conv_layer_forward.1} parent=5 // pred_check
        %p159 = pneg %p158
      $region22: #{conv_layer_forward.1} parent=5 // pred_check_branch
        %161 = sbr.rel (%p159) target = $region24
      $region23: #{conv_layer_forward.1} parent=5 // pred_region
        // Predicated region
        $region25: #{conv_layer_forward.1} parent=23 // pred_check
          %p162 = pneg %p44
        $region26: #{conv_layer_forward.1} parent=23 // pred_check_branch
          %164 = sbr.rel (%p162) target = $region28
        $region27: #{conv_layer_forward.1} parent=23 // pred_region
          %s165 = smul.u32 32, %s19
          %p166 = scmp.lt.s32.totalorder %s165, 63
          %s167 = scalar_select %p166, %s165, 63
          %s168 = smul.addr %s167, 4
          %s169 = scalar_lea.vmem %s0, %s168
          %s170 = smul.u32 32, %s19
        $region28: #{conv_layer_forward.1} parent=23 // pred_fallthru
          _
      $region24: #{conv_layer_forward.1} parent=5 // pred_fallthru
        _
      %p171 = scmp.le.s32.totalorder 1, %s12
      %p172 = scmp.lt.s32.totalorder %s12, 3
      %p173 = pnand %p171, %p172
      %p174 = pneg %p173
      // Predicated region
      $region29: #{conv_layer_forward.1} parent=5 // pred_check
        _
      $region30: #{conv_layer_forward.1} parent=5 // pred_check_branch
        %176 = sbr.rel (%p173) target = $region32
      $region31: #{conv_layer_forward.1} parent=5 // pred_region
        %s177 = ssub.s32 %s12, 1
        %s178 = smul.u32 32, %s21
        %p179 = scmp.lt.s32.totalorder %s178, 63
        %s180 = scalar_select %p179, %s178, 63
        %s181 = smul.addr %s180, 4
        %s182 = scalar_lea.vmem %s0, %s181
        %p183 = pneg %p50
        %p184 = pneg %p47
        %p185 = scmp.lt.s32.totalorder %s22, 0
        %s186 = scalar_select %p185, %s22, 0
        %s187 = smul.addr %s186, 4
        %s188 = scalar_lea.vmem %s1, %s187
        %p189 = pneg %p76
        %p190 = pneg %p73
        %p191 = scmp.lt.s32.totalorder %s22, 0
        %s192 = scalar_select %p191, %s22, 0
        %s193 = scalar_lea.vmem %s2, %s192
        %p194 = pneg %p102
        %p195 = pneg %p99
        %p196 = pneg %p130
        %p197 = pneg %p127
        %s198 = sand.u32 %s117, 1
        %s199 = scalar_lea.sflag [#allocation3], %s198
        %s200 = sand.u32 %s117, 1
        %s201 = smul.addr %s200, 256
        %s202 = scalar_lea.vmem [#allocation2], %s201
        %s203 = smul.u32 32, %s21
        %p204 = scmp.lt.s32.totalorder %s203, 63
        %s205 = scalar_select %p204, %s203, 63
        %s206 = smul.addr %s205, 4
        %s207 = scalar_lea.vmem %s0, %s206
        %s208 = smul.u32 32, %s21
        %p209 = scmp.lt.s32.totalorder %s22, 0
        %s210 = scalar_select %p209, %s22, 0
        %s211 = smul.addr %s210, 4
        %s212 = scalar_lea.vmem %s1, %s211
        %p213 = scmp.lt.s32.totalorder %s22, 0
        %s214 = scalar_select %p213, %s22, 0
        %s215 = scalar_lea.vmem %s2, %s214
        %s216 = smul.u32 32, %s21
        %v218 = vld [vmem:[%s207] sm:$0xf]
        %v219 = vld [vmem:[%s207 + $0x4] sm:$0xf]
        %v220 = vld [vmem:[%s207 + $0x8] sm:$0xf]
        %v221 = vld [vmem:[%s207 + $0xc] sm:$0xf]
        %v222 = vld [vmem:[%s207 + $0x10] sm:$0xf]
        %v223 = vld [vmem:[%s207 + $0x14] sm:$0xf]
        %v224 = vld [vmem:[%s207 + $0x18] sm:$0xf]
        %v225 = vld [vmem:[%s207 + $0x1c] sm:$0xf]
        %v226 = vld [vmem:[%s207 + $0x20] sm:$0xf]
        %v227 = vld [vmem:[%s207 + $0x24] sm:$0xf]
        %v228 = vld [vmem:[%s207 + $0x28] sm:$0xf]
        %v229 = vld [vmem:[%s207 + $0x2c] sm:$0xf]
        %v230 = vld [vmem:[%s207 + $0x30] sm:$0xf]
        %v231 = vld [vmem:[%s207 + $0x34] sm:$0xf]
        %v232 = vld [vmem:[%s207 + $0x38] sm:$0xf]
        %v233 = vld [vmem:[%s207 + $0x3c] sm:$0xf]
        %v234 = vld [vmem:[%s207 + $0x40] sm:$0xf]
        %v235 = vld [vmem:[%s207 + $0x44] sm:$0xf]
        %v236 = vld [vmem:[%s207 + $0x48] sm:$0xf]
        %v237 = vld [vmem:[%s207 + $0x4c] sm:$0xf]
        %v238 = vld [vmem:[%s207 + $0x50] sm:$0xf]
        %v239 = vld [vmem:[%s207 + $0x54] sm:$0xf]
        %v240 = vld [vmem:[%s207 + $0x58] sm:$0xf]
        %v241 = vld [vmem:[%s207 + $0x5c] sm:$0xf]
        %v242 = vld [vmem:[%s207 + $0x60] sm:$0xf]
        %v243 = vld [vmem:[%s207 + $0x64] sm:$0xf]
        %v244 = vld [vmem:[%s207 + $0x68] sm:$0xf]
        %v245 = vld [vmem:[%s207 + $0x6c] sm:$0xf]
        %v246 = vld [vmem:[%s207 + $0x70] sm:$0xf]
        %v247 = vld [vmem:[%s207 + $0x74] sm:$0xf]
        %v248 = vld [vmem:[%s207 + $0x78] sm:$0xf]
        %v249 = vld [vmem:[%s207 + $0x7c] sm:$0xf]
        %v250 = vld [vmem:[%s212] sm:$0xf]
        %v251 = vld [vmem:[%s212 + $0x4] sm:$0xf]
        %v252 = vld [vmem:[%s212 + $0x8] sm:$0xf]
        %v253 = vld [vmem:[%s212 + $0xc] sm:$0xf]
        %v254 = vld [vmem:[%s212 + $0x10] sm:$0xf]
        %v255 = vld [vmem:[%s212 + $0x14] sm:$0xf]
        %v256 = vld [vmem:[%s212 + $0x18] sm:$0xf]
        %v257 = vld [vmem:[%s212 + $0x1c] sm:$0xf]
        %v258 = vld [vmem:[%s212 + $0x20] sm:$0xf]
        %v259 = vld [vmem:[%s212 + $0x24] sm:$0xf]
        %v260 = vld [vmem:[%s212 + $0x28] sm:$0xf]
        %v261 = vld [vmem:[%s212 + $0x2c] sm:$0xf]
        %v262 = vld [vmem:[%s212 + $0x30] sm:$0xf]
        %v263 = vld [vmem:[%s212 + $0x34] sm:$0xf]
        %v264 = vld [vmem:[%s215] sm:$0x1]
        %v266 = vlaneseq
        %v267 = vshrl.u32 %v266, 7
        %v268 = vsub.s32 0, %v267
        %v269 = vrot.slane %v264, %v268
        %v303 = vunpack.c.l.b16 %v218
        %v304 = vunpack.c.l.b16 %v219
        %v305 = vunpack.c.l.b16 %v220
        %v306 = vunpack.c.l.b16 %v221
        %v307 = vunpack.c.l.b16 %v222
        %v308 = vunpack.c.l.b16 %v223
        %v309 = vunpack.c.l.b16 %v224
        %v310 = vunpack.c.l.b16 %v225
        %v311 = vunpack.c.l.b16 %v226
        %v312 = vunpack.c.l.b16 %v227
        %v313 = vunpack.c.l.b16 %v228
        %v314 = vunpack.c.l.b16 %v229
        %v315 = vunpack.c.l.b16 %v230
        %v316 = vunpack.c.l.b16 %v231
        %v317 = vunpack.c.l.b16 %v232
        %v318 = vunpack.c.l.b16 %v233
        %v319 = vunpack.c.l.b16 %v234
        %v320 = vunpack.c.l.b16 %v235
        %v321 = vunpack.c.l.b16 %v236
        %v322 = vunpack.c.l.b16 %v237
        %v323 = vunpack.c.l.b16 %v238
        %v324 = vunpack.c.l.b16 %v239
        %v325 = vunpack.c.l.b16 %v240
        %v326 = vunpack.c.l.b16 %v241
        %v327 = vunpack.c.l.b16 %v242
        %v328 = vunpack.c.l.b16 %v243
        %v329 = vunpack.c.l.b16 %v244
        %v330 = vunpack.c.l.b16 %v245
        %v331 = vunpack.c.l.b16 %v246
        %v332 = vunpack.c.l.b16 %v247
        %v333 = vunpack.c.l.b16 %v248
        %v334 = vunpack.c.l.b16 %v249
        %v335 = vpack.c.b16 %v304, %v303
        %v336 = vpack.c.b16 %v306, %v305
        %v337 = vpack.c.b16 %v308, %v307
        %v338 = vpack.c.b16 %v310, %v309
        %v339 = vpack.c.b16 %v312, %v311
        %v340 = vpack.c.b16 %v314, %v313
        %v341 = vpack.c.b16 %v316, %v315
        %v342 = vpack.c.b16 %v318, %v317
        %v343 = vpack.c.b16 %v320, %v319
        %v344 = vpack.c.b16 %v322, %v321
        %v345 = vpack.c.b16 %v324, %v323
        %v346 = vpack.c.b16 %v326, %v325
        %v347 = vpack.c.b16 %v328, %v327
        %v348 = vpack.c.b16 %v330, %v329
        %v349 = vpack.c.b16 %v332, %v331
        %v350 = vpack.c.b16 %v334, %v333
        %v365 = vunpack.c.l.b16 %v250
        %v366 = vunpack.c.l.b16 %v251
        %v367 = vunpack.c.l.b16 %v252
        %v368 = vunpack.c.l.b16 %v253
        %v369 = vunpack.c.l.b16 %v254
        %v370 = vunpack.c.l.b16 %v255
        %v371 = vunpack.c.l.b16 %v256
        %v372 = vunpack.c.l.b16 %v257
        %v373 = vunpack.c.l.b16 %v258
        %v374 = vunpack.c.l.b16 %v259
        %v375 = vunpack.c.l.b16 %v260
        %v376 = vunpack.c.l.b16 %v261
        %v377 = vunpack.c.l.b16 %v262
        %v378 = vunpack.c.l.b16 %v263
        %v379 = vpack.c.b16 %v366, %v365
        %v380 = vpack.c.b16 %v368, %v367
        %v381 = vpack.c.b16 %v370, %v369
        %v382 = vpack.c.b16 %v372, %v371
        %v383 = vpack.c.b16 %v374, %v373
        %v384 = vpack.c.b16 %v376, %v375
        %v385 = vpack.c.b16 %v378, %v377
        %vm393 = vcmask 916480
        %v395 = vsel %vm393, %v335, 0
        %v398 = vsel %vm393, %v336, 0
        %v401 = vsel %vm393, %v337, 0
        %v404 = vsel %vm393, %v338, 0
        %v407 = vsel %vm393, %v339, 0
        %v410 = vsel %vm393, %v340, 0
        %v413 = vsel %vm393, %v341, 0
        %v416 = vsel %vm393, %v342, 0
        %v419 = vsel %vm393, %v343, 0
        %v422 = vsel %vm393, %v344, 0
        %v425 = vsel %vm393, %v345, 0
        %v428 = vsel %vm393, %v346, 0
        %v431 = vsel %vm393, %v347, 0
        %v434 = vsel %vm393, %v348, 0
        %v437 = vsel %vm393, %v349, 0
        %v440 = vsel %vm393, %v350, 0
        %442 = vmatprep.subr.bf16.mxu0 0
        %443 = vmatpush1.bf16.msra.mxu0 %v379
        %444 = vmatprep.subr.bf16.mxu0 0
        %445 = vmatpush1.bf16.msra.mxu0 %v380
        %446 = vmatprep.subr.bf16.mxu0 0
        %447 = vmatpush1.bf16.msra.mxu0 %v381
        %448 = vmatprep.subr.bf16.mxu0 0
        %449 = vmatpush1.bf16.msra.mxu0 %v382
        %450 = vmatprep.subr.bf16.mxu0 0
        %451 = vmatpush1.bf16.msra.mxu0 %v383
        %452 = vmatprep.subr.bf16.mxu0 0
        %453 = vmatpush1.bf16.msra.mxu0 %v384
        %454 = vmatprep.subr.bf16.mxu0 0
        %455 = vmatpush1.bf16.msra.mxu0 %v385
        %456 = vmatprep.subr.bf16.mxu0 0
        %457 = vmatpush1.bf16.msra.mxu0 0
        %458 = vmatprep.subr.bf16.mxu0 0
        %459 = vmatpush1.bf16.msra.mxu0 0
        %460 = vmatprep.subr.bf16.mxu0 0
        %461 = vmatpush1.bf16.msra.mxu0 0
        %462 = vmatprep.subr.bf16.mxu0 0
        %463 = vmatpush1.bf16.msra.mxu0 0
        %464 = vmatprep.subr.bf16.mxu0 0
        %465 = vmatpush1.bf16.msra.mxu0 0
        %466 = vmatprep.subr.bf16.mxu0 0
        %467 = vmatpush1.bf16.msra.mxu0 0
        %468 = vmatprep.subr.bf16.mxu0 0
        %469 = vmatpush1.bf16.msra.mxu0 0
        %470 = vmatprep.subr.bf16.mxu0 0
        %471 = vmatpush1.bf16.msra.mxu0 0
        %472 = vmatprep.subr.bf16.mxu0 0
        %473 = vmatpush1.bf16.msra.mxu0 0
        %474 = vmatprep.mubr.bf16.mxu0 0
        %475 = vmatmul.mubr.bf16.gmra.mrb[0].mxu0 %v395
        %v476 = vpop.f32.mrb[0].mxu0
        %v477 = vadd.f32 %v269, %v476
        %v478 = vpop.f32.mrb[0].mxu0
        %v479 = vpop.f32.mrb[0].mxu0
        %v480 = vadd.f32 %v269, %v479
        %v481 = vpop.f32.mrb[0].mxu0
        %482 = vmatprep.mubr.bf16.mxu0 0
        %483 = vmatmul.mubr.bf16.gmra.mrb[0].mxu0 %v398
        %v484 = vpop.f32.mrb[0].mxu0
        %v485 = vadd.f32 %v269, %v484
        %v486 = vpop.f32.mrb[0].mxu0
        %v487 = vpop.f32.mrb[0].mxu0
        %v488 = vadd.f32 %v269, %v487
        %v489 = vpop.f32.mrb[0].mxu0
        %490 = vmatprep.mubr.bf16.mxu0 0
        %491 = vmatmul.mubr.bf16.gmra.mrb[0].mxu0 %v401
        %v492 = vpop.f32.mrb[0].mxu0
        %v493 = vadd.f32 %v269, %v492
        %v494 = vpop.f32.mrb[0].mxu0
        %v495 = vpop.f32.mrb[0].mxu0
        %v496 = vadd.f32 %v269, %v495
        %v497 = vpop.f32.mrb[0].mxu0
        %498 = vmatprep.mubr.bf16.mxu0 0
        %499 = vmatmul.mubr.bf16.gmra.mrb[0].mxu0 %v404
        %v500 = vpop.f32.mrb[0].mxu0
        %v501 = vadd.f32 %v269, %v500
        %v502 = vpop.f32.mrb[0].mxu0
        %v503 = vpop.f32.mrb[0].mxu0
        %v504 = vadd.f32 %v269, %v503
        %v505 = vpop.f32.mrb[0].mxu0
        %506 = vmatprep.mubr.bf16.mxu0 0
        %507 = vmatmul.mubr.bf16.gmra.mrb[0].mxu0 %v407
        %v508 = vpop.f32.mrb[0].mxu0
        %v509 = vadd.f32 %v269, %v508
        %v510 = vpop.f32.mrb[0].mxu0
        %v511 = vpop.f32.mrb[0].mxu0
        %v512 = vadd.f32 %v269, %v511
        %v513 = vpop.f32.mrb[0].mxu0
        %514 = vmatprep.mubr.bf16.mxu0 0
        %515 = vmatmul.mubr.bf16.gmra.mrb[0].mxu0 %v410
        %v516 = vpop.f32.mrb[0].mxu0
        %v517 = vadd.f32 %v269, %v516
        %v518 = vpop.f32.mrb[0].mxu0
        %v519 = vpop.f32.mrb[0].mxu0
        %v520 = vadd.f32 %v269, %v519
        %v521 = vpop.f32.mrb[0].mxu0
        %522 = vmatprep.mubr.bf16.mxu0 0
        %523 = vmatmul.mubr.bf16.gmra.mrb[0].mxu0 %v413
        %v524 = vpop.f32.mrb[0].mxu0
        %v525 = vadd.f32 %v269, %v524
        %v526 = vpop.f32.mrb[0].mxu0
        %v527 = vpop.f32.mrb[0].mxu0
        %v528 = vadd.f32 %v269, %v527
        %v529 = vpop.f32.mrb[0].mxu0
        %530 = vmatprep.mubr.bf16.mxu0 0
        %531 = vmatmul.mubr.bf16.gmra.mrb[0].mxu0 %v416
        %v532 = vpop.f32.mrb[0].mxu0
        %v533 = vadd.f32 %v269, %v532
        %v534 = vpop.f32.mrb[0].mxu0
        %v535 = vpop.f32.mrb[0].mxu0
        %v536 = vadd.f32 %v269, %v535
        %v537 = vpop.f32.mrb[0].mxu0
        %538 = vmatprep.mubr.bf16.mxu0 0
        %539 = vmatmul.mubr.bf16.gmra.mrb[0].mxu0 %v419
        %v540 = vpop.f32.mrb[0].mxu0
        %v541 = vadd.f32 %v269, %v540
        %v542 = vpop.f32.mrb[0].mxu0
        %v543 = vpop.f32.mrb[0].mxu0
        %v544 = vadd.f32 %v269, %v543
        %v545 = vpop.f32.mrb[0].mxu0
        %546 = vmatprep.mubr.bf16.mxu0 0
        %547 = vmatmul.mubr.bf16.gmra.mrb[0].mxu0 %v422
        %v548 = vpop.f32.mrb[0].mxu0
        %v549 = vadd.f32 %v269, %v548
        %v550 = vpop.f32.mrb[0].mxu0
        %v551 = vpop.f32.mrb[0].mxu0
        %v552 = vadd.f32 %v269, %v551
        %v553 = vpop.f32.mrb[0].mxu0
        %554 = vmatprep.mubr.bf16.mxu0 0
        %555 = vmatmul.mubr.bf16.gmra.mrb[0].mxu0 %v425
        %v556 = vpop.f32.mrb[0].mxu0
        %v557 = vadd.f32 %v269, %v556
        %v558 = vpop.f32.mrb[0].mxu0
        %v559 = vpop.f32.mrb[0].mxu0
        %v560 = vadd.f32 %v269, %v559
        %v561 = vpop.f32.mrb[0].mxu0
        %562 = vmatprep.mubr.bf16.mxu0 0
        %563 = vmatmul.mubr.bf16.gmra.mrb[0].mxu0 %v428
        %v564 = vpop.f32.mrb[0].mxu0
        %v565 = vadd.f32 %v269, %v564
        %v566 = vpop.f32.mrb[0].mxu0
        %v567 = vpop.f32.mrb[0].mxu0
        %v568 = vadd.f32 %v269, %v567
        %v569 = vpop.f32.mrb[0].mxu0
        %570 = vmatprep.mubr.bf16.mxu0 0
        %571 = vmatmul.mubr.bf16.gmra.mrb[0].mxu0 %v431
        %v572 = vpop.f32.mrb[0].mxu0
        %v573 = vadd.f32 %v269, %v572
        %v574 = vpop.f32.mrb[0].mxu0
        %v575 = vpop.f32.mrb[0].mxu0
        %v576 = vadd.f32 %v269, %v575
        %v577 = vpop.f32.mrb[0].mxu0
        %578 = vmatprep.mubr.bf16.mxu0 0
        %579 = vmatmul.mubr.bf16.gmra.mrb[0].mxu0 %v434
        %v580 = vpop.f32.mrb[0].mxu0
        %v581 = vadd.f32 %v269, %v580
        %v582 = vpop.f32.mrb[0].mxu0
        %v583 = vpop.f32.mrb[0].mxu0
        %v584 = vadd.f32 %v269, %v583
        %v585 = vpop.f32.mrb[0].mxu0
        %586 = vmatprep.mubr.bf16.mxu0 0
        %587 = vmatmul.mubr.bf16.gmra.mrb[0].mxu0 %v437
        %v588 = vpop.f32.mrb[0].mxu0
        %v589 = vadd.f32 %v269, %v588
        %v590 = vpop.f32.mrb[0].mxu0
        %v591 = vpop.f32.mrb[0].mxu0
        %v592 = vadd.f32 %v269, %v591
        %v593 = vpop.f32.mrb[0].mxu0
        %594 = vmatprep.mubr.bf16.mxu0 0
        %595 = vmatmul.mubr.bf16.gmra.mrb[0].mxu0 %v440
        %v596 = vpop.f32.mrb[0].mxu0
        %v597 = vadd.f32 %v269, %v596
        %v598 = vpop.f32.mrb[0].mxu0
        %v599 = vpop.f32.mrb[0].mxu0
        %v600 = vadd.f32 %v269, %v599
        %v601 = vpop.f32.mrb[0].mxu0
        %602 = vdwg.mxu0
        %603 = vst [vmem:[%s202] sm:$0xff] %v477
        %604 = vst [vmem:[%s202 + $0x8] sm:$0xff] %v480
        %605 = vst [vmem:[%s202 + $0x10] sm:$0xff] %v485
        %606 = vst [vmem:[%s202 + $0x18] sm:$0xff] %v488
        %607 = vst [vmem:[%s202 + $0x20] sm:$0xff] %v493
        %608 = vst [vmem:[%s202 + $0x28] sm:$0xff] %v496
        %609 = vst [vmem:[%s202 + $0x30] sm:$0xff] %v501
        %610 = vst [vmem:[%s202 + $0x38] sm:$0xff] %v504
        %611 = vst [vmem:[%s202 + $0x40] sm:$0xff] %v509
        %612 = vst [vmem:[%s202 + $0x48] sm:$0xff] %v512
        %613 = vst [vmem:[%s202 + $0x50] sm:$0xff] %v517
        %614 = vst [vmem:[%s202 + $0x58] sm:$0xff] %v520
        %615 = vst [vmem:[%s202 + $0x60] sm:$0xff] %v525
        %616 = vst [vmem:[%s202 + $0x68] sm:$0xff] %v528
        %617 = vst [vmem:[%s202 + $0x70] sm:$0xff] %v533
        %618 = vst [vmem:[%s202 + $0x78] sm:$0xff] %v536
        %619 = vst [vmem:[%s202 + $0x80] sm:$0xff] %v541
        %620 = vst [vmem:[%s202 + $0x88] sm:$0xff] %v544
        %621 = vst [vmem:[%s202 + $0x90] sm:$0xff] %v549
        %622 = vst [vmem:[%s202 + $0x98] sm:$0xff] %v552
        %623 = vst [vmem:[%s202 + $0xa0] sm:$0xff] %v557
        %624 = vst [vmem:[%s202 + $0xa8] sm:$0xff] %v560
        %625 = vst [vmem:[%s202 + $0xb0] sm:$0xff] %v565
        %626 = vst [vmem:[%s202 + $0xb8] sm:$0xff] %v568
        %627 = vst [vmem:[%s202 + $0xc0] sm:$0xff] %v573
        %628 = vst [vmem:[%s202 + $0xc8] sm:$0xff] %v576
        %629 = vst [vmem:[%s202 + $0xd0] sm:$0xff] %v581
        %630 = vst [vmem:[%s202 + $0xd8] sm:$0xff] %v584
        %631 = vst [vmem:[%s202 + $0xe0] sm:$0xff] %v589
        %632 = vst [vmem:[%s202 + $0xe8] sm:$0xff] %v592
        %633 = vst [vmem:[%s202 + $0xf0] sm:$0xff] %v597
        %634 = vst [vmem:[%s202 + $0xf8] sm:$0xff] %v600
        %s635 = sand.u32 %s117, 1
        %s636 = scalar_lea.sflag [#allocation3], %s635
        %s637 = sand.u32 %s117, 1
        %s638 = smul.addr %s637, 256
        %s639 = scalar_lea.vmem [#allocation2], %s638
        // Predicated region
        $region33: #{conv_layer_forward.1} parent=31 // pred_check
          %p640 = pneg %p127
        $region34: #{conv_layer_forward.1} parent=31 // pred_check_branch
          %642 = sbr.rel (%p640) target = $region36
        $region35: #{conv_layer_forward.1} parent=31 // pred_region
          %s643 = smul.u32 32, %s21
          %s645 = ssub.s32 4096, 4096
          %646 = vsyncadd %s636, %s645
          %s647 = sadd.s32 %s22, %s643
          %s648 = smul.addr %s647, 128
          %s649 = scalar_lea.hbm %s3, %s648
          %s650 = sshll.u32 %s639, 4
          %s651 = int_to_ptr.vmem [resolvable:$true] %s650
          %656 = dma.vmem_to_hbm [thread:$0]  %s651, 4096, %s649, %s636, 128, 128, 8
        $region36: #{conv_layer_forward.1} parent=31 // pred_fallthru
          _
      $region32: #{conv_layer_forward.1} parent=5 // pred_fallthru
        _
      %p657 = scmp.le.s32.totalorder 2, %s12
      // Predicated region
      $region37: #{conv_layer_forward.1} parent=5 // pred_check
        %p658 = pneg %p657
      $region38: #{conv_layer_forward.1} parent=5 // pred_check_branch
        %660 = sbr.rel (%p658) target = $region40
      $region39: #{conv_layer_forward.1} parent=5 // pred_region
        %s661 = ssub.s32 %s12, 2
        // Predicated region
        $region41: #{conv_layer_forward.1} parent=39 // pred_check
          %p662 = pneg %p133
        $region42: #{conv_layer_forward.1} parent=39 // pred_check_branch
          %664 = sbr.rel (%p662) target = $region44
        $region43: #{conv_layer_forward.1} parent=39 // pred_region
          %s665 = sand.u32 %s118, 1
          %s666 = scalar_lea.sflag [#allocation3], %s665
          %s667 = sand.u32 %s118, 1
          %s668 = smul.addr %s667, 256
          %s669 = scalar_lea.vmem [#allocation2], %s668
          %670 = dma.done %s666, 4096
        $region44: #{conv_layer_forward.1} parent=39 // pred_fallthru
          _
      $region40: #{conv_layer_forward.1} parent=5 // pred_fallthru
        _
    $region6: #{conv_layer_forward.1} parent=1 // loop_footer
      %s16 = sadd.s32 1, %s12
    $region7: #{conv_layer_forward.1} parent=1 // loop_footer_branch
      %11 = sbr.rel target = $region3
    $region8: #{conv_layer_forward.1} parent=1 // loop_exit
      _
    %671 = vsyncpa [#allocation3], 1
    %s672 = scalar_lea.sflag [#allocation3], 1
    %673 = vsyncpa %s672, 1

</llo_original>
